<compile_context>
chip_gen: v6e
topology: v6e:2x2x1
jax: 0.10.0
libtpu: 0.0.40
codegen_flags: <defaults>
</compile_context>

<pallas_src>
import functools

import jax
import jax.numpy as jnp
from jax.experimental import pallas as pl
from jax.experimental.pallas import tpu as pltpu

_EPS = 1e-9


def _loss_kernel(o1_ref, o2_ref, p1_ref, p2_ref, t_ref, out_ref, *,
                 margin, batch, tile_rows):
    # o1/o2: (tb, D) embeddings (native dtype), p1/p2: (tb, C) logits,
    # t: (tb, 2) int32 labels, out: (1, 128) f32 per-tile partial loss sum.
    i = pl.program_id(0)

    # Valid-row mask for the ragged edge block (rows >= batch hold unspecified
    # data since inputs are not padded).  Everything below is strictly per-row,
    # so garbage rows cannot contaminate valid rows; they are zeroed via select
    # (not multiply) so NaN/Inf in garbage rows cannot leak into the sum.
    row_ids = i * tile_rows + jax.lax.broadcasted_iota(
        jnp.int32, (tile_rows, 1), 0)
    valid = row_ids < batch

    # ---- contrastive part (embeddings) -------------------------------------
    o1 = o1_ref[...].astype(jnp.float32)
    o2 = o2_ref[...].astype(jnp.float32)
    diff = o2 - o1                                                  # VPU
    dist = jnp.sum(diff * diff, axis=1, keepdims=True)              # (tb, 1)

    t1 = t_ref[:, 0:1]
    t2 = t_ref[:, 1:2]
    same = (t1 == t2).astype(jnp.float32)                           # (tb, 1)

    hinge = jnp.maximum(margin - jnp.sqrt(dist + _EPS), 0.0)        # EUP sqrt
    con = 0.5 * (same * dist + (1.0 - same) * hinge * hinge)        # (tb, 1)

    # ---- cross-entropy part (logits) ----------------------------------------
    p1 = p1_ref[...].astype(jnp.float32)
    p2 = p2_ref[...].astype(jnp.float32)
    cls = jax.lax.broadcasted_iota(jnp.int32, p1.shape, 1)          # (tb, C)

    def row_ce(logits, tgt):
        m = jnp.max(logits, axis=1, keepdims=True)
        lse = m + jnp.log(jnp.sum(jnp.exp(logits - m), axis=1, keepdims=True))
        # TODO(synk): out-of-range targets silently yield tgt_logit = 0 (loss =
        # logsumexp) instead of raising like torch.nn.CrossEntropyLoss.
        tgt_logit = jnp.sum(jnp.where(cls == tgt, logits, 0.0),
                            axis=1, keepdims=True)
        return lse - tgt_logit                                      # (tb, 1)

    per_row = con + row_ce(p1, t1) + row_ce(p2, t2)                 # (tb, 1)
    per_row = jnp.where(valid, per_row, 0.0)                        # mask garbage

    tile_sum = jnp.sum(per_row, axis=0, keepdims=True)              # (1, 1)

    # Lane-dense output: one unmasked (1, 128) store; partial sum in lane 0.
    lane = jax.lax.broadcasted_iota(jnp.int32, (1, 128), 1)
    out_ref[...] = jnp.where(lane == 0, tile_sum, jnp.float32(0.0))


def _vmem_limit_bytes():
    cap = None
    try:
        info = pltpu.get_tpu_info()
        cap = getattr(info, "vmem_capacity_bytes", None)
    except Exception:
        cap = None
    if not cap:
        cap = 64 * 1024 * 1024  # conservative fallback: v7x physical per-core VMEM
    # ~70% of physical: ~90 MiB on v5e/v6e (128 MiB), ~45 MiB on v7x (64 MiB).
    return max(16 * 1024 * 1024, min(int(cap * 0.7), 96 * 1024 * 1024))


def _sublane_align(*dtypes):
    # f32 -> 8, bf16 -> 16, int8/fp8 -> 32 sublanes per packed vreg.
    align = 8
    for d in dtypes:
        isz = jnp.dtype(d).itemsize
        align = max(align, 8 * max(1, 4 // max(1, isz)))
    return align


def _pick_tile(batch, emb_dim, n_classes, emb_dtype, logit_dtype, block_rows,
               vmem_limit):
    emb_isz = jnp.dtype(emb_dtype).itemsize
    logit_isz = jnp.dtype(logit_dtype).itemsize
    # Per-row VMEM bytes: double-buffered DMA blocks for 2 embeddings, 2 logit
    # blocks and the merged (tb, 2) int32 target block, plus headroom for the
    # in-kernel f32 upcast copies / elementwise temporaries of the wide blocks.
    per_row = (2 * (2 * emb_dim * emb_isz + 2 * n_classes * logit_isz + 2 * 4)
               + 4 * (emb_dim + n_classes) * 4)
    budget = int(vmem_limit * 0.75)
    tb = max(1, budget // per_row)
    if block_rows is not None:
        tb = min(tb, int(block_rows))
    if tb >= batch:
        return int(batch)                 # single full-array block (always legal)
    align = _sublane_align(emb_dtype, logit_dtype)
    tb = max(align, (tb // align) * align)
    if tb >= batch:
        return int(batch)
    return int(tb)


def contrastive_ce_loss(output1, output2, pred1, pred2, target1, target2,
                        margin=2.0, reduction="mean", block_rows=None):
    assert reduction in ("sum", "mean")
    B, D = output1.shape
    C = pred1.shape[-1]

    # Merge the two tiny label vectors into a single (B, 2) int32 input.
    targets = jnp.stack(
        [target1.reshape(B).astype(jnp.int32),
         target2.reshape(B).astype(jnp.int32)], axis=1)

    vmem_limit = _vmem_limit_bytes()
    tb = _pick_tile(B, D, C, output1.dtype, pred1.dtype, block_rows, vmem_limit)
    ntiles = (B + tb - 1) // tb

    kernel = functools.partial(_loss_kernel, margin=float(margin),
                               batch=int(B), tile_rows=int(tb))
    row_map = lambda i: (i, 0)

    emb_isz = jnp.dtype(output1.dtype).itemsize
    logit_isz = jnp.dtype(pred1.dtype).itemsize
    cost = pl.CostEstimate(
        flops=int(B * (3 * D + 8 * C + 16)),
        transcendentals=int(B * (2 * C + 3)),     # exps, logs, sqrt
        bytes_accessed=int(2 * B * D * emb_isz + 2 * B * C * logit_isz
                           + B * 8 + ntiles * 512),
    )

    tile_sums = pl.pallas_call(
        kernel,
        out_shape=jax.ShapeDtypeStruct((1, ntiles * 128), jnp.float32),
        grid=(ntiles,),
        in_specs=[
            pl.BlockSpec((tb, D), row_map),
            pl.BlockSpec((tb, D), row_map),
            pl.BlockSpec((tb, C), row_map),
            pl.BlockSpec((tb, C), row_map),
            pl.BlockSpec((tb, 2), row_map),
        ],
        out_specs=pl.BlockSpec((1, 128), lambda i: (0, i)),
        compiler_params=pltpu.CompilerParams(
            dimension_semantics=("parallel",),
            vmem_limit_bytes=vmem_limit),
        cost_estimate=cost,
    )(output1, output2, pred1, pred2, targets)

    # Final tiny reduction in the wrapper: the two CE means and the contrastive
    # mean all divide by the same B, so a single /B covers all terms.
    total = jnp.sum(tile_sums)
    loss = total / B
    if reduction == "mean":
        loss = loss * 0.5
    return loss


def _reference(output1, output2, pred1, pred2, target1, target2,
               margin=2.0, reduction="mean"):
    def ce(logits, tgt):
        logits = logits.astype(jnp.float32)
        lse = jax.scipy.special.logsumexp(logits, axis=1)
        tl = jnp.take_along_axis(logits, tgt[:, None].astype(jnp.int32), axis=1)[:, 0]
        return jnp.mean(lse - tl)

    ce_loss = ce(pred1, target1) + ce(pred2, target2)
    same = (target1 == target2).astype(jnp.float32)
    d = jnp.sum((output2.astype(jnp.float32) - output1.astype(jnp.float32)) ** 2, axis=1)
    h = jnp.maximum(margin - jnp.sqrt(d + _EPS), 0.0)
    con_loss = jnp.mean(0.5 * (same * d + (1.0 - same) * h * h))
    total = ce_loss + con_loss
    return total if reduction == "sum" else total / 2.0


if __name__ == "__main__":
    key = jax.random.PRNGKey(0)
    keys = jax.random.split(key, 6)

    B, D, C = 8, 32, 4   # 8 embedding pairs, 32-dim embeddings, 4 classes
    output1 = jax.random.normal(keys[0], (B, D), dtype=jnp.float32)
    output2 = jax.random.normal(keys[1], (B, D), dtype=jnp.float32)
    pred1 = jax.random.normal(keys[2], (B, C), dtype=jnp.float32)
    pred2 = jax.random.normal(keys[3], (B, C), dtype=jnp.float32)
    target1 = jax.random.randint(keys[4], (B,), 0, C, dtype=jnp.int32)
    target2 = jax.random.randint(keys[5], (B,), 0, C, dtype=jnp.int32)

    # default: margin=2.0, reduction='mean' (single full-array block)
    loss = jax.block_until_ready(
        contrastive_ce_loss(output1, output2, pred1, pred2, target1, target2))
    ref = _reference(output1, output2, pred1, pred2, target1, target2)
    assert jnp.allclose(loss, ref, rtol=1e-5, atol=1e-5), (loss, ref)

    # reduction='sum'
    loss_s = jax.block_until_ready(
        contrastive_ce_loss(output1, output2, pred1, pred2, target1, target2,
                            reduction="sum"))
    ref_s = _reference(output1, output2, pred1, pred2, target1, target2,
                       reduction="sum")
    assert jnp.allclose(loss_s, ref_s, rtol=1e-5, atol=1e-5), (loss_s, ref_s)

    # f32, ragged batch with a multi-tile grid (grid=2, edge block masked in-kernel)
    B2 = 13
    keys2 = jax.random.split(jax.random.PRNGKey(0), 6)
    o1r = jax.random.normal(keys2[0], (B2, D), dtype=jnp.float32)
    o2r = jax.random.normal(keys2[1], (B2, D), dtype=jnp.float32)
    p1r = jax.random.normal(keys2[2], (B2, C), dtype=jnp.float32)
    p2r = jax.random.normal(keys2[3], (B2, C), dtype=jnp.float32)
    t1r = jax.random.randint(keys2[4], (B2,), 0, C, dtype=jnp.int32)
    t2r = jax.random.randint(keys2[5], (B2,), 0, C, dtype=jnp.int32)
    loss_r = jax.block_until_ready(
        contrastive_ce_loss(o1r, o2r, p1r, p2r, t1r, t2r, block_rows=8))
    ref_r = _reference(o1r, o2r, p1r, p2r, t1r, t2r)
    assert jnp.allclose(loss_r, ref_r, rtol=1e-5, atol=1e-5), (loss_r, ref_r)

    # bf16 inputs, ragged batch, 16-row (bf16-packed) tiles, multi-tile grid
    B3 = 19
    keys3 = jax.random.split(jax.random.PRNGKey(1), 6)
    o1b = jax.random.normal(keys3[0], (B3, D), dtype=jnp.bfloat16)
    o2b = jax.random.normal(keys3[1], (B3, D), dtype=jnp.bfloat16)
    p1b = jax.random.normal(keys3[2], (B3, C), dtype=jnp.bfloat16)
    p2b = jax.random.normal(keys3[3], (B3, C), dtype=jnp.bfloat16)
    t1b = jax.random.randint(keys3[4], (B3,), 0, C, dtype=jnp.int32)
    t2b = jax.random.randint(keys3[5], (B3,), 0, C, dtype=jnp.int32)
    loss_b = jax.block_until_ready(
        contrastive_ce_loss(o1b, o2b, p1b, p2b, t1b, t2b, block_rows=16))
    ref_b = _reference(o1b, o2b, p1b, p2b, t1b, t2b)
    assert jnp.allclose(loss_b, ref_b, rtol=1e-3, atol=1e-3), (loss_b, ref_b)

    print("KERNEL_OK")
</pallas_src>

<mosaic_0001>
module attributes {stable_mosaic.version = 11 : i64} {
  func.func @_loss_kernel(%arg0: i32, %arg1: memref<8x32xf32, #tpu.memory_space<vmem>>, %arg2: memref<8x32xf32, #tpu.memory_space<vmem>>, %arg3: memref<8x4xf32, #tpu.memory_space<vmem>>, %arg4: memref<8x4xf32, #tpu.memory_space<vmem>>, %arg5: memref<8x2xi32, #tpu.memory_space<vmem>>, %arg6: memref<1x128xf32, #tpu.memory_space<vmem>>) attributes {dimension_semantics = [#tpu.dimension_semantics<parallel>], iteration_bounds = array<i64: 1>, scalar_prefetch = 0 : i64, scratch_operands = 0 : i64, tpu.core_type = #tpu.core_type<tc>, window_params = [{transform_indices = @transform_0, window_bounds = array<i64: 8, 32>}, {transform_indices = @transform_1, window_bounds = array<i64: 8, 32>}, {transform_indices = @transform_2, window_bounds = array<i64: 8, 4>}, {transform_indices = @transform_3, window_bounds = array<i64: 8, 4>}, {transform_indices = @transform_4, window_bounds = array<i64: 8, 2>}, {transform_indices = @transform_5, window_bounds = array<i64: 1, 128>}]} {
    %c8_i32 = arith.constant 8 : i32
    %0 = arith.muli %arg0, %c8_i32 : i32
    %1 = tpu.iota {dimensions = array<i32: 0>} : vector<8x1xi32>
    %2 = vector.broadcast %0 : i32 to vector<8x1xi32>
    %3 = arith.addi %2, %1 : vector<8x1xi32>
    %c8_i32_0 = arith.constant 8 : i32
    %4 = vector.broadcast %c8_i32_0 : i32 to vector<8x1xi32>
    %5 = arith.cmpi slt, %3, %4 : vector<8x1xi32>
    %c0 = arith.constant 0 : index
    %c0_1 = arith.constant 0 : index
    %6 = vector.load %arg1[%c0, %c0_1] : memref<8x32xf32, #tpu.memory_space<vmem>>, vector<8x32xf32>
    %c0_2 = arith.constant 0 : index
    %c0_3 = arith.constant 0 : index
    %7 = vector.load %arg2[%c0_2, %c0_3] : memref<8x32xf32, #tpu.memory_space<vmem>>, vector<8x32xf32>
    %8 = arith.subf %7, %6 : vector<8x32xf32>
    %9 = arith.mulf %8, %8 : vector<8x32xf32>
    %cst = arith.constant dense<0.000000e+00> : vector<8xf32>
    %10 = vector.multi_reduction <add>, %9, %cst [1] : vector<8x32xf32> to vector<8xf32>
    %11 = vector.shape_cast %10 : vector<8xf32> to vector<8x1xf32>
    %c0_4 = arith.constant 0 : index
    %c0_5 = arith.constant 0 : index
    %12 = vector.load %arg5[%c0_4, %c0_5] : memref<8x2xi32, #tpu.memory_space<vmem>>, vector<8x1xi32>
    %c0_6 = arith.constant 0 : index
    %c1 = arith.constant 1 : index
    %13 = vector.load %arg5[%c0_6, %c1] : memref<8x2xi32, #tpu.memory_space<vmem>>, vector<8x1xi32>
    %14 = arith.cmpi eq, %12, %13 : vector<8x1xi32>
    %15 = arith.extui %14 : vector<8x1xi1> to vector<8x1xi32>
    %16 = arith.sitofp %15 : vector<8x1xi32> to vector<8x1xf32>
    %cst_7 = arith.constant 9.99999971E-10 : f32
    %17 = vector.broadcast %cst_7 : f32 to vector<8x1xf32>
    %18 = arith.addf %11, %17 : vector<8x1xf32>
    %19 = math.sqrt %18 : vector<8x1xf32>
    %cst_8 = arith.constant 2.000000e+00 : f32
    %20 = vector.broadcast %cst_8 : f32 to vector<8x1xf32>
    %21 = arith.subf %20, %19 : vector<8x1xf32>
    %cst_9 = arith.constant 0.000000e+00 : f32
    %22 = vector.broadcast %cst_9 : f32 to vector<8x1xf32>
    %23 = arith.maximumf %21, %22 : vector<8x1xf32>
    %24 = arith.mulf %16, %11 : vector<8x1xf32>
    %cst_10 = arith.constant 1.000000e+00 : f32
    %25 = vector.broadcast %cst_10 : f32 to vector<8x1xf32>
    %26 = arith.subf %25, %16 : vector<8x1xf32>
    %27 = arith.mulf %26, %23 : vector<8x1xf32>
    %28 = arith.mulf %27, %23 : vector<8x1xf32>
    %29 = arith.addf %24, %28 : vector<8x1xf32>
    %cst_11 = arith.constant 5.000000e-01 : f32
    %30 = vector.broadcast %cst_11 : f32 to vector<8x1xf32>
    %31 = arith.mulf %30, %29 : vector<8x1xf32>
    %c0_12 = arith.constant 0 : index
    %c0_13 = arith.constant 0 : index
    %32 = vector.load %arg3[%c0_12, %c0_13] : memref<8x4xf32, #tpu.memory_space<vmem>>, vector<8x4xf32>
    %c0_14 = arith.constant 0 : index
    %c0_15 = arith.constant 0 : index
    %33 = vector.load %arg4[%c0_14, %c0_15] : memref<8x4xf32, #tpu.memory_space<vmem>>, vector<8x4xf32>
    %34 = tpu.iota {dimensions = array<i32: 1>} : vector<8x4xi32>
    %cst_16 = arith.constant dense<0xFF800000> : vector<8xf32>
    %35 = vector.multi_reduction <maximumf>, %32, %cst_16 [1] : vector<8x4xf32> to vector<8xf32>
    %36 = vector.shape_cast %35 : vector<8xf32> to vector<8x1xf32>
    %37 = vector.broadcast %36 : vector<8x1xf32> to vector<8x4xf32>
    %38 = arith.subf %32, %37 : vector<8x4xf32>
    %39 = math.exp %38 : vector<8x4xf32>
    %cst_17 = arith.constant dense<0.000000e+00> : vector<8xf32>
    %40 = vector.multi_reduction <add>, %39, %cst_17 [1] : vector<8x4xf32> to vector<8xf32>
    %41 = vector.shape_cast %40 : vector<8xf32> to vector<8x1xf32>
    %42 = math.log %41 : vector<8x1xf32>
    %43 = arith.addf %36, %42 : vector<8x1xf32>
    %44 = vector.broadcast %12 : vector<8x1xi32> to vector<8x4xi32>
    %45 = arith.cmpi eq, %34, %44 : vector<8x4xi32>
    %cst_18 = arith.constant 0.000000e+00 : f32
    %46 = vector.broadcast %cst_18 : f32 to vector<8x4xf32>
    %47 = arith.select %45, %32, %46 : vector<8x4xi1>, vector<8x4xf32>
    %cst_19 = arith.constant dense<0.000000e+00> : vector<8xf32>
    %48 = vector.multi_reduction <add>, %47, %cst_19 [1] : vector<8x4xf32> to vector<8xf32>
    %49 = vector.shape_cast %48 : vector<8xf32> to vector<8x1xf32>
    %50 = arith.subf %43, %49 : vector<8x1xf32>
    %51 = arith.addf %31, %50 : vector<8x1xf32>
    %cst_20 = arith.constant dense<0xFF800000> : vector<8xf32>
    %52 = vector.multi_reduction <maximumf>, %33, %cst_20 [1] : vector<8x4xf32> to vector<8xf32>
    %53 = vector.shape_cast %52 : vector<8xf32> to vector<8x1xf32>
    %54 = vector.broadcast %53 : vector<8x1xf32> to vector<8x4xf32>
    %55 = arith.subf %33, %54 : vector<8x4xf32>
    %56 = math.exp %55 : vector<8x4xf32>
    %cst_21 = arith.constant dense<0.000000e+00> : vector<8xf32>
    %57 = vector.multi_reduction <add>, %56, %cst_21 [1] : vector<8x4xf32> to vector<8xf32>
    %58 = vector.shape_cast %57 : vector<8xf32> to vector<8x1xf32>
    %59 = math.log %58 : vector<8x1xf32>
    %60 = arith.addf %53, %59 : vector<8x1xf32>
    %61 = vector.broadcast %13 : vector<8x1xi32> to vector<8x4xi32>
    %62 = arith.cmpi eq, %34, %61 : vector<8x4xi32>
    %cst_22 = arith.constant 0.000000e+00 : f32
    %63 = vector.broadcast %cst_22 : f32 to vector<8x4xf32>
    %64 = arith.select %62, %33, %63 : vector<8x4xi1>, vector<8x4xf32>
    %cst_23 = arith.constant dense<0.000000e+00> : vector<8xf32>
    %65 = vector.multi_reduction <add>, %64, %cst_23 [1] : vector<8x4xf32> to vector<8xf32>
    %66 = vector.shape_cast %65 : vector<8xf32> to vector<8x1xf32>
    %67 = arith.subf %60, %66 : vector<8x1xf32>
    %68 = arith.addf %51, %67 : vector<8x1xf32>
    %cst_24 = arith.constant 0.000000e+00 : f32
    %69 = vector.broadcast %cst_24 : f32 to vector<8x1xf32>
    %70 = arith.select %5, %68, %69 : vector<8x1xi1>, vector<8x1xf32>
    %cst_25 = arith.constant dense<0.000000e+00> : vector<1xf32>
    %71 = vector.multi_reduction <add>, %70, %cst_25 [0] : vector<8x1xf32> to vector<1xf32>
    %72 = vector.shape_cast %71 : vector<1xf32> to vector<1x1xf32>
    %73 = tpu.iota {dimensions = array<i32: 1>} : vector<1x128xi32>
    %c0_i32 = arith.constant 0 : i32
    %74 = vector.broadcast %c0_i32 : i32 to vector<1x128xi32>
    %75 = arith.cmpi eq, %73, %74 : vector<1x128xi32>
    %cst_26 = arith.constant 0.000000e+00 : f32
    %76 = vector.shape_cast %72 : vector<1x1xf32> to vector<1x1xf32>
    %77 = vector.broadcast %76 : vector<1x1xf32> to vector<1x128xf32>
    %78 = vector.broadcast %cst_26 : f32 to vector<1x128xf32>
    %79 = arith.select %75, %77, %78 : vector<1x128xi1>, vector<1x128xf32>
    %c0_27 = arith.constant 0 : index
    %c0_28 = arith.constant 0 : index
    %80 = vector.load %arg6[%c0_27, %c0_28] : memref<1x128xf32, #tpu.memory_space<vmem>>, vector<1x128xf32>
    tpu.vector_store %arg6[%c0_27, %c0_28], %79 {strides = array<i32>} : memref<1x128xf32, #tpu.memory_space<vmem>>, vector<1x128xf32>,
    return
  }
  func.func @transform_0(%arg0: i32) -> (i32, i32) {
    %c0_i32 = arith.constant 0 : i32
    %c0_i32_0 = arith.constant 0 : i32
    return %arg0, %c0_i32 : i32, i32
  }
  func.func @transform_1(%arg0: i32) -> (i32, i32) {
    %c0_i32 = arith.constant 0 : i32
    %c0_i32_0 = arith.constant 0 : i32
    return %arg0, %c0_i32 : i32, i32
  }
  func.func @transform_2(%arg0: i32) -> (i32, i32) {
    %c0_i32 = arith.constant 0 : i32
    %c0_i32_0 = arith.constant 0 : i32
    return %arg0, %c0_i32 : i32, i32
  }
  func.func @transform_3(%arg0: i32) -> (i32, i32) {
    %c0_i32 = arith.constant 0 : i32
    %c0_i32_0 = arith.constant 0 : i32
    return %arg0, %c0_i32 : i32, i32
  }
  func.func @transform_4(%arg0: i32) -> (i32, i32) {
    %c0_i32 = arith.constant 0 : i32
    %c0_i32_0 = arith.constant 0 : i32
    return %arg0, %c0_i32 : i32, i32
  }
  func.func @transform_5(%arg0: i32) -> (i32, i32) {
    %c0_i32 = arith.constant 0 : i32
    %c0_i32_0 = arith.constant 0 : i32
    return %c0_i32, %arg0 : i32, i32
  }
}

</mosaic_0001>

<llo_original>
// kernel: tpu_custom_call.1
$region0: #{tpu_custom_call.1}
  #allocation0 [shape = 'u32[]', space=smem, size = 0x4, offset = 0x4, fixed_abs, tag = 'smem constant byte address 0x4 - core index']
  #allocation1 [shape = 'u32[144,128]{1,0:T(1,128)}', space=vmem, size = 0x12000, scoped, tag = 'internal scratch']
  %s0 = inlined_call_operand.vmem [shape: f32[8,32], index: 0, kind: input, shape index: {}]
  %s1 = inlined_call_operand.vmem [shape: f32[8,32], index: 1, kind: input, shape index: {}]
  %s2 = inlined_call_operand.vmem [shape: f32[8,4], index: 2, kind: input, shape index: {}]
  %s3 = inlined_call_operand.vmem [shape: f32[8,4], index: 3, kind: input, shape index: {}]
  %s4 = inlined_call_operand.vmem [shape: s32[8,2], index: 4, kind: input, shape index: {}]
  %s5 = inlined_call_operand.hbm [shape: f32[1,128], index: 5, kind: output, shape index: {}]
  %s6 = sld [smem:[#allocation0]]
  $region30: #{tpu_custom_call.1} parent=0
    _
  %s8 = ssub.s32 1, %s6
  %s9 = scalar_select 0, %s8, %s6
  $region1: #{tpu_custom_call.1} parent=0
    #allocation2 [shape = 'u8[512]{0}', space=vmem, size = 0x400, scoped, tag = 'output window, operand 0, single buffered']
    #allocation3 [shape = 's32[1]{0}', space=sflag, size = 0x4, scoped, tag = 'scoped memory for tpu_custom_call.1']
    %10 = vsyncpa [#allocation3], 0
    // Predicated region
    $region2: #{tpu_custom_call.1} parent=1 // pred_check
      _
    $region3: #{tpu_custom_call.1} parent=1 // pred_check_branch
      %12 = sbr.rel (0) target = $region5
    $region4: #{tpu_custom_call.1} parent=1 // pred_region
      _
    $region5: #{tpu_custom_call.1} parent=1 // pred_fallthru
      _
    // Predicated region
    $region6: #{tpu_custom_call.1} parent=1 // pred_check
      _
    $region7: #{tpu_custom_call.1} parent=1 // pred_check_branch
      %14 = sbr.rel (0) target = $region9
    $region8: #{tpu_custom_call.1} parent=1 // pred_region
      _
    $region9: #{tpu_custom_call.1} parent=1 // pred_fallthru
      _
    // Predicated region
    $region10: #{tpu_custom_call.1} parent=1 // pred_check
      _
    $region11: #{tpu_custom_call.1} parent=1 // pred_check_branch
      %16 = sbr.rel (0) target = $region13
    $region12: #{tpu_custom_call.1} parent=1 // pred_region
      _
    $region13: #{tpu_custom_call.1} parent=1 // pred_fallthru
      _
    // Predicated region
    $region14: #{tpu_custom_call.1} parent=1 // pred_check
      _
    $region15: #{tpu_custom_call.1} parent=1 // pred_check_branch
      %18 = sbr.rel (0) target = $region17
    $region16: #{tpu_custom_call.1} parent=1 // pred_region
      _
    $region17: #{tpu_custom_call.1} parent=1 // pred_fallthru
      _
    // Predicated region
    $region18: #{tpu_custom_call.1} parent=1 // pred_check
      _
    $region19: #{tpu_custom_call.1} parent=1 // pred_check_branch
      %20 = sbr.rel (0) target = $region21
    $region20: #{tpu_custom_call.1} parent=1 // pred_region
      _
    $region21: #{tpu_custom_call.1} parent=1 // pred_fallthru
      _
    %s21 = smul.u32 0, 8
    %v22 = vlaneseq
    %v23 = vshrl.u32 %v22, 7
    %v24 = vstv %s21
    %v25 = vadd.s32 %v24, %v23
    %vm26 = vcmp.lt.s32.totalorder %v25, 8
    %v27 = vld [vmem:[%s0] sm:$0xff]
    %v28 = vld [vmem:[%s1] sm:$0xff]
    %v29 = vsub.f32 %v28, %v27
    %v30 = vmul.f32 %v29, %v29
    %vm31 = vcmask 261120
    %v32 = vsel %vm31, %v30, 0.0
    %33 = vadd.xlane.f32.xlu0 %v32
    %v34 = vpop.xlane.xlu0 %33
    %v35 = vld [vmem:[%s4] sm:$0xff]
    %36 = vrot.lane.b32.xlu0 %v35, 127
    %v37 = vpop.permute.xlu0 %36
    %vm38 = vcmp.eq.s32.totalorder %v35, %v37
    %v39 = vsel %vm38, 1, 0
    %v40 = vcvt.s32.f32 %v39
    %v41 = vadd.f32 %v34, 1e-09
    %v42 = vrsqrt.pop %v41
    %v43 = vmul.f32 %v41, %v42
    %vm44 = vcmp.eq.f32.partialorder %v41, inf
    %v45 = vsel %vm44, %v41, %v43
    %vm46 = vcmp.eq.f32.partialorder %v41, 0.0
    %v47 = vand.u32 %v41, 2147483648
    %v48 = vsel %vm46, %v47, %v45
    %v49 = vsub.f32 2.0, %v48
    %v50 = vmax.f32 %v49, 0.0
    %v51 = vmul.f32 %v40, %v34
    %v52 = vsub.f32 1.0, %v40
    %v53 = vmul.f32 %v52, %v50
    %v54 = vmul.f32 %v53, %v50
    %v55 = vadd.f32 %v51, %v54
    %v56 = vmul.f32 %v55, 0.5
    %v57 = vld [vmem:[%s2] sm:$0xff]
    %v58 = vld [vmem:[%s3] sm:$0xff]
    %v59 = vlaneseq
    %v60 = vand.u32 %v59, 127
    %vm61 = vcmask 31744
    %v62 = vsel %vm61, %v57, -inf
    %63 = vmax.xlane.f32.xlu0 %v62
    %v64 = vpop.xlane.xlu0 %63
    %v65 = vsub.f32 %v57, %v64
    %v66 = vmul.f32 %v65, 1.442695
    %v67 = vpow.pop %v66
    %v68 = vsel %vm61, %v67, 0.0
    %69 = vadd.xlane.f32.xlu0 %v68
    %v70 = vpop.xlane.xlu0 %69
    %v71 = vlog2.pop %v70
    %v72 = vmul.f32 %v71, 0.6931472
    %v73 = vadd.f32 %v64, %v72
    %74 = vset.pattern.permute.xlu0 0
    %75 = vperm.xlu0 %74, %v35
    %v76 = vpop.permute.xlu0 %75
    %vm77 = vcmp.eq.s32.totalorder %v60, %v76
    %v78 = vsel %vm77, %v57, 0.0
    %v79 = vsel %vm61, %v78, 0.0
    %80 = vadd.xlane.f32.xlu0 %v79
    %v81 = vpop.xlane.xlu0 %80
    %v82 = vsub.f32 %v73, %v81
    %v83 = vadd.f32 %v56, %v82
    %v84 = vsel %vm61, %v58, -inf
    %85 = vmax.xlane.f32.xlu0 %v84
    %v86 = vpop.xlane.xlu0 %85
    %v87 = vsub.f32 %v58, %v86
    %v88 = vmul.f32 %v87, 1.442695
    %v89 = vpow.pop %v88
    %v90 = vsel %vm61, %v89, 0.0
    %91 = vadd.xlane.f32.xlu0 %v90
    %v92 = vpop.xlane.xlu0 %91
    %v93 = vlog2.pop %v92
    %v94 = vmul.f32 %v93, 0.6931472
    %v95 = vadd.f32 %v86, %v94
    %96 = vset.pattern.permute.xlu0 1
    %97 = vperm.xlu0 %96, %v35
    %v98 = vpop.permute.xlu0 %97
    %vm99 = vcmp.eq.s32.totalorder %v60, %v98
    %v100 = vsel %vm99, %v58, 0.0
    %v101 = vsel %vm61, %v100, 0.0
    %102 = vadd.xlane.f32.xlu0 %v101
    %v103 = vpop.xlane.xlu0 %102
    %v104 = vsub.f32 %v95, %v103
    %v105 = vadd.f32 %v83, %v104
    %v106 = vsel %vm26, %v105, 0.0
    %vm107 = vcmask 7168
    %v108 = vsel %vm107, %v106, 0.0
    %v109 = vrot.slane %v108, 4
    %v110 = vadd.f32 %v108, %v109
    %v111 = vrot.slane %v110, 2
    %v112 = vadd.f32 %v110, %v111
    %v113 = vrot.slane %v112, 1
    %v114 = vadd.f32 %v112, %v113
    %vm115 = vcmp.eq.s32.totalorder %v60, 0
    %117 = vset.pattern.permute.xlu0 0
    %118 = vperm.xlu0 %117, %v114
    %v119 = vpop.permute.xlu0 %118
    %v121 = vsel %vm115, %v119, 0.0
    %122 = vst [vmem:[#allocation2] sm:$0x1] %v121
    // Predicated region
    $region22: #{tpu_custom_call.1} parent=1 // pred_check
      _
    $region23: #{tpu_custom_call.1} parent=1 // pred_check_branch
      %124 = sbr.rel (0) target = $region25
    $region24: #{tpu_custom_call.1} parent=1 // pred_region
      %s126 = ssub.s32 16, 16
      %127 = vsyncadd [#allocation3], %s126
      %s129 = sshll.u32 [#allocation2], 4
      %s130 = int_to_ptr.vmem [resolvable:$true] %s129
      %132 = dma.vmem_to_hbm [thread:$0]  %s130, 16, %s5, [#allocation3]
    $region25: #{tpu_custom_call.1} parent=1 // pred_fallthru
      _
    // Predicated region
    $region26: #{tpu_custom_call.1} parent=1 // pred_check
      _
    $region27: #{tpu_custom_call.1} parent=1 // pred_check_branch
      %134 = sbr.rel (0) target = $region29
    $region28: #{tpu_custom_call.1} parent=1 // pred_region
      %135 = dma.done [#allocation3], 16
    $region29: #{tpu_custom_call.1} parent=1 // pred_fallthru
      _
    %136 = vsyncpa [#allocation3], 1

</llo_original>
